<compile_context>
chip_gen: v7x
topology: tpu7x:2x2x1
jax: 0.10.0
libtpu: 0.0.40
codegen_flags: <defaults>
</compile_context>

<pallas_src>
import functools

import numpy as np
import jax
import jax.numpy as jnp
from jax import lax
from jax.experimental import pallas as pl
from jax.experimental.pallas import tpu as pltpu


# ----------------------------------------------------------------------------
# Parameter precomputation (numpy glue; deterministic, mirrors __init__)
# ----------------------------------------------------------------------------
def _toeplitz(c, r):
    """scipy.linalg.toeplitz(c, r): out[i,j] = c[i-j] if i>=j else r[j-i]."""
    c = np.asarray(c)
    r = np.asarray(r)
    ij = np.subtract.outer(np.arange(len(c)), np.arange(len(r)))
    return np.where(ij >= 0, c[np.abs(ij)], r[np.abs(ij)])


def _vonmises_pdf(x, kappa):
    """scipy.stats.vonmises(kappa).pdf(x) = exp(kappa*cos(x)) / (2*pi*I0(kappa))."""
    return np.exp(kappa * np.cos(x)) / (2.0 * np.pi * np.i0(kappa))


def build_transform_matrices(num_bins, max_yaw, vms_interp_conc):
    thetas = np.arange(0.0, 2.0 * np.pi, 2.0 * np.pi / num_bins)
    thetas_flip = np.zeros_like(thetas)
    thetas_flip[1:] = np.flip(thetas[1:])
    pose_angle_bins_toeplitz = _toeplitz(thetas_flip, thetas)

    angles_yaw = np.arange(-max_yaw, max_yaw + 1, 1)

    # pre_calculate_better_bins
    pre_calc_bins = []
    for a in range(angles_yaw.shape[0]):
        diff_thetas = thetas + angles_yaw[a] * np.pi / 180.0
        diff_thetas_flip = np.zeros_like(diff_thetas)
        diff_thetas_flip[1:] = np.flip(diff_thetas[1:])
        diff_thetas_flip[0] = diff_thetas[0]
        pre_calc_bins.append(_toeplitz(diff_thetas_flip, diff_thetas))
    pre_calc_bins = np.stack(pre_calc_bins, 0)

    # pre_calculate_transform
    inverse_mat = np.linalg.inv(_vonmises_pdf(pose_angle_bins_toeplitz, vms_interp_conc))
    transforms = [np.dot(_vonmises_pdf(pre_calc_bins[p], vms_interp_conc), inverse_mat)
                  for p in range(len(pre_calc_bins))]
    return np.stack(transforms, 0).astype(np.float32), angles_yaw


def prepare_transform_matrices(transform_matrices_np):
    """Host-side layout prep: pre-transpose each T[a] (NO padding).

    Returns Tt of shape (A, nb, nb) with Tt[a, j, i] = T[a, i, j], so
    out[s, i] = sum_j X[s, j] * Tt[a, j, i]  is a plain  X @ Tt[a]
    (contract lhs last dim against rhs first dim -> MXU-native, no in-kernel
    transpose).  ~106 KiB for the default config; DMA'd once, stays resident.
    """
    tt = np.ascontiguousarray(np.transpose(transform_matrices_np, (0, 2, 1)))
    return jnp.asarray(tt.astype(np.float32))


# ----------------------------------------------------------------------------
# Pallas kernel
#   idx_ref : SMEM (Bp,) int32     (scalar-prefetched gather indices)
#   t_ref   : VMEM (A, nb, nb)     (resident, pre-transposed, UNPADDED transforms)
#   x_ref   : VMEM (bt, S, nb)     (input batch block, unpadded layout)
#   o_ref   : VMEM (bt, S, nb)
# ----------------------------------------------------------------------------
def _vonmises_interp_kernel(idx_ref, t_ref, x_ref, o_ref):
    blk = pl.program_id(0)
    bt = x_ref.shape[0]

    def body(i, carry):
        a = idx_ref[blk * bt + i]          # scalar gather index from SMEM
        tt = t_ref[a]                      # (nb, nb) dynamic read of resident VMEM copy
        x = x_ref[i]                       # (S, nb)
        out = lax.dot_general(
            x, tt,
            dimension_numbers=(((1,), (0,)), ((), ())),   # X @ T^T, MXU-native
            preferred_element_type=jnp.float32,
        )
        o_ref[i] = out.astype(o_ref.dtype)
        return carry

    # Capped unroll: keeps LLO visibility without holding many 128-wide RHS
    # tiles live at once (vreg-pressure / spill avoidance).
    lax.fori_loop(0, bt, body, 0, unroll=min(4, max(bt, 1)))


@functools.partial(jax.jit, static_argnames=("max_yaw", "batch_tile"))
def vonmises_interpolation_forward(inp, yaw, transform_matrices_t, *, max_yaw,
                                   batch_tile=8):
    """inp: (B, S, nb) f32; yaw: (B,) or (B,1) f32 radians -> (B, S, nb) f32."""
    B, S, nb = inp.shape
    A = transform_matrices_t.shape[0]

    yaw = jnp.reshape(yaw, (-1,))
    # index = max_yaw + round(yaw * 180/pi), clamped to the valid matrix range.
    # (PyTorch reference does not clamp; it errors for |yaw| > max_yaw deg.)
    idx = jnp.clip(
        jnp.round(yaw * (180.0 / np.pi)).astype(jnp.int32) + jnp.int32(max_yaw),
        0, A - 1)

    # Batch tiling: ensure >= 2 grid steps whenever B >= 2 so the "parallel"
    # axis can shard across both TensorCores on v7x (per-step cost ~0.35 us).
    bt = int(max(1, min(batch_tile, -(-B // 2))))
    nblk = -(-B // bt)
    Bp = nblk * bt
    pad_b = Bp - B

    inp = inp.astype(jnp.float32)
    x = jnp.pad(inp, ((0, pad_b), (0, 0), (0, 0))) if pad_b else inp
    idx_p = jnp.pad(idx, ((0, pad_b),)) if pad_b else idx

    cost = pl.CostEstimate(
        flops=2 * Bp * S * nb * nb,
        transcendentals=0,
        bytes_accessed=4 * (A * nb * nb + 2 * Bp * S * nb + Bp),
    )

    grid_spec = pltpu.PrefetchScalarGridSpec(
        num_scalar_prefetch=1,
        grid=(nblk,),
        in_specs=[
            # full UNPADDED transform tensor, constant block index -> DMA'd
            # once, resident in VMEM across all grid steps (~106 KiB).
            pl.BlockSpec((A, nb, nb), lambda b, idx_ref: (0, 0, 0)),
            pl.BlockSpec((bt, S, nb), lambda b, idx_ref: (b, 0, 0)),
        ],
        out_specs=pl.BlockSpec((bt, S, nb), lambda b, idx_ref: (b, 0, 0)),
    )
    out_p = pl.pallas_call(
        _vonmises_interp_kernel,
        out_shape=jax.ShapeDtypeStruct((Bp, S, nb), jnp.float32),
        grid_spec=grid_spec,
        compiler_params=pltpu.CompilerParams(
            dimension_semantics=("parallel",)),
        cost_estimate=cost,
    )(idx_p, transform_matrices_t, x)

    return out_p[:B]


# ----------------------------------------------------------------------------
# Pure-JAX reference for correctness check
# ----------------------------------------------------------------------------
def _reference_forward(inp, yaw, transform_matrices, max_yaw):
    yaw = jnp.reshape(yaw, (-1,))
    A = transform_matrices.shape[0]
    idx = jnp.clip(
        jnp.round(yaw * (180.0 / np.pi)).astype(jnp.int32) + jnp.int32(max_yaw),
        0, A - 1)
    T = transform_matrices[idx]                       # (B, nb, nb)
    # out[b,s,i] = sum_j T[b,i,j] inp[b,s,j]
    return jnp.einsum("bij,bsj->bsi", T, inp)


if __name__ == "__main__":
    # Synthetic config (deterministic; mimics cfg.ROTATION.*)
    num_bins = 36          # 10-degree resolution
    max_yaw = 10           # angles_yaw = -10..10  -> 21 transform matrices
    vms_interp_conc = 4.0

    transform_matrices_np, angles_yaw = build_transform_matrices(
        num_bins, max_yaw, vms_interp_conc)
    transform_matrices = jnp.asarray(transform_matrices_np)      # (21, 36, 36) f32
    transform_matrices_t = prepare_transform_matrices(transform_matrices_np)  # (21,36,36)

    key = jax.random.PRNGKey(0)
    # Two small configs: (B=2) exercises the 2-step grid with bt=1;
    # (B=5) exercises batch padding (Bp=6, bt=3, nblk=2).
    for (batch, slots) in [(2, 4), (5, 4)]:
        key, k1, k2 = jax.random.split(key, 3)
        inp = jax.random.normal(k1, (batch, slots, num_bins), dtype=jnp.float32)
        # yaw in radians, within +/- max_yaw degrees so the gather index is in range
        yaw = jax.random.uniform(
            k2, (batch,), dtype=jnp.float32,
            minval=-max_yaw * np.pi / 180.0, maxval=max_yaw * np.pi / 180.0)

        out = vonmises_interpolation_forward(
            inp, yaw, transform_matrices_t, max_yaw=max_yaw)
        out = jax.block_until_ready(out)

        ref = _reference_forward(inp, yaw, transform_matrices, max_yaw)
        np.testing.assert_allclose(np.asarray(out), np.asarray(ref),
                                   rtol=1e-5, atol=1e-5)

    print("KERNEL_OK")
</pallas_src>

<mosaic_0001>
module attributes {stable_mosaic.version = 11 : i64} {
  func.func @_vonmises_interp_kernel(%arg0: i32, %arg1: memref<2xi32, #tpu.memory_space<smem>>, %arg2: memref<21x36x36xf32, #tpu.memory_space<vmem>>, %arg3: memref<1x4x36xf32, #tpu.memory_space<vmem>>, %arg4: memref<1x4x36xf32, #tpu.memory_space<vmem>>) attributes {dimension_semantics = [#tpu.dimension_semantics<parallel>], iteration_bounds = array<i64: 2>, scalar_prefetch = 1 : i64, scratch_operands = 0 : i64, tpu.core_type = #tpu.core_type<tc>, window_params = [{pipeline_mode = #tpu.pipeline_mode<synchronous>, transform_indices = @transform_0, window_bounds = array<i64: 21, 36, 36>}, {transform_indices = @transform_1, window_bounds = array<i64: 1, 4, 36>}, {transform_indices = @transform_2, window_bounds = array<i64: 1, 4, 36>}]} {
    %c0_i32 = arith.constant 0 : i32
    %c1_i32 = arith.constant 1 : i32
    %0 = arith.muli %arg0, %c1_i32 : i32
    %1 = arith.addi %0, %c0_i32 : i32
    %2 = arith.index_cast %1 : i32 to index
    %3 = memref.load %arg1[%2] : memref<2xi32, #tpu.memory_space<smem>>
    %4 = arith.index_cast %3 : i32 to index
    %c0 = arith.constant 0 : index
    %c0_0 = arith.constant 0 : index
    %5 = vector.load %arg2[%4, %c0, %c0_0] : memref<21x36x36xf32, #tpu.memory_space<vmem>>, vector<1x36x36xf32>
    %6 = vector.shape_cast %5 : vector<1x36x36xf32> to vector<36x36xf32>
    %7 = arith.index_cast %c0_i32 : i32 to index
    %c0_1 = arith.constant 0 : index
    %c0_2 = arith.constant 0 : index
    %8 = vector.load %arg3[%7, %c0_1, %c0_2] : memref<1x4x36xf32, #tpu.memory_space<vmem>>, vector<1x4x36xf32>
    %9 = vector.shape_cast %8 : vector<1x4x36xf32> to vector<4x36xf32>
    %cst = arith.constant dense<0.000000e+00> : vector<4x36xf32>
    %10 = tpu.matmul %9, %6, %cst {dimension_numbers = #tpu.dot_dimension_numbers<[1], [0], [0], [1], [0, 0, 1, 1], [], []>} : vector<4x36xf32>, vector<36x36xf32>, vector<4x36xf32> -> vector<4x36xf32>
    %11 = arith.index_cast %c0_i32 : i32 to index
    %c0_3 = arith.constant 0 : index
    %c0_4 = arith.constant 0 : index
    %12 = vector.load %arg4[%11, %c0_3, %c0_4] : memref<1x4x36xf32, #tpu.memory_space<vmem>>, vector<1x4x36xf32>
    %13 = vector.shape_cast %12 : vector<1x4x36xf32> to vector<4x36xf32>
    %14 = vector.shape_cast %10 : vector<4x36xf32> to vector<1x4x36xf32>
    tpu.vector_store %arg4[%11, %c0_3, %c0_4], %14 {strides = array<i32>} : memref<1x4x36xf32, #tpu.memory_space<vmem>>, vector<1x4x36xf32>,
    %c1_i32_5 = arith.constant 1 : i32
    return
  }
  func.func @transform_0(%arg0: i32, %arg1: memref<2xi32, #tpu.memory_space<smem>>) -> (i32, i32, i32) {
    %c0_i32 = arith.constant 0 : i32
    %c0_i32_0 = arith.constant 0 : i32
    %c0_i32_1 = arith.constant 0 : i32
    %c0_i32_2 = arith.constant 0 : i32
    return %c0_i32, %c0_i32_0, %c0_i32_1 : i32, i32, i32
  }
  func.func @transform_1(%arg0: i32, %arg1: memref<2xi32, #tpu.memory_space<smem>>) -> (i32, i32, i32) {
    %c0_i32 = arith.constant 0 : i32
    %c0_i32_0 = arith.constant 0 : i32
    %c0_i32_1 = arith.constant 0 : i32
    return %arg0, %c0_i32, %c0_i32_0 : i32, i32, i32
  }
  func.func @transform_2(%arg0: i32, %arg1: memref<2xi32, #tpu.memory_space<smem>>) -> (i32, i32, i32) {
    %c0_i32 = arith.constant 0 : i32
    %c0_i32_0 = arith.constant 0 : i32
    %c0_i32_1 = arith.constant 0 : i32
    return %arg0, %c0_i32, %c0_i32_0 : i32, i32, i32
  }
}

</mosaic_0001>

<llo_original>
// kernel: vonmises_interpolation_forward.1
$region0: #{vonmises_interpolation_forward.1}
  #allocation0 [shape = 'u32[]', space=smem, size = 0x4, offset = 0x4, fixed_abs, tag = 'smem constant byte address 0x4 - core index']
  #allocation1 [shape = 'u32[144,128]{1,0:T(1,128)}', space=vmem, size = 0x12000, scoped, tag = 'internal scratch']
  #allocation2 [shape = 's32[1]{0}', space=sflag, size = 0x4, scoped, tag = 'scoped memory for vonmises_interpolation_forward.1']
  #allocation3 [shape = 'u8[512]{0}', space=smem, size = 0x200, scoped, tag = 'prefetched SMEM operand 0']
  %s0 = inlined_call_operand.vmem [shape: s32[2], index: 0, kind: input, shape index: {}]
  %s1 = inlined_call_operand.hbm [shape: f32[21,36,36], index: 1, kind: input, shape index: {}]
  %s2 = inlined_call_operand.hbm [shape: f32[2,4,36], index: 2, kind: input, shape index: {}]
  %s3 = inlined_call_operand.hbm [shape: f32[2,4,36], index: 3, kind: output, shape index: {}]
  %s4 = sld [smem:[#allocation0]]
  $region49: #{vonmises_interpolation_forward.1} parent=0
    _
  %s6 = ssub.s32 1, %s4
  %s7 = scalar_select 0, %s6, %s4
  %s8 = sshll.u32 %s0, 4
  %s9 = int_to_ptr.vmem [resolvable:$true] %s8
  %11 = dma.vmem_to_smem %s9, 16, [#allocation3], [#allocation2]
  %12 = dma.done [#allocation2], 16
  %13 = sfence
  $region1: #{vonmises_interpolation_forward.1} parent=0
    #allocation4 [shape = 'u8[430080]{0}', space=vmem, size = 0x69000, scoped, tag = 'input window, operand 1, single buffered']
    #allocation5 [shape = 's32[2]{0}', space=sflag, size = 0x8, scoped, tag = 'scoped memory for vonmises_interpolation_forward.1']
    #allocation6 [shape = 's32[2]{0}', space=sflag, size = 0x8, scoped, tag = 'scoped memory for vonmises_interpolation_forward.1']
    #allocation7 [shape = 'u8[4096]{0}', space=vmem, size = 0x1000, scoped, tag = 'input window, operand 2']
    #allocation8 [shape = 's32[2]{0}', space=sflag, size = 0x8, scoped, tag = 'scoped memory for vonmises_interpolation_forward.1']
    #allocation9 [shape = 'u8[4096]{0}', space=vmem, size = 0x1000, scoped, tag = 'output window, operand 0']
    %14 = vsyncpa [#allocation5], 0
    %15 = vsyncpa [#allocation8], 0
    %s16 = scalar_lea.sflag [#allocation8], 1
    %17 = vsyncpa %s16, 0
    %18 = vsyncpa [#allocation6], 0
    %s19 = scalar_lea.sflag [#allocation6], 1
    %20 = vsyncpa %s19, 0
    loop: start=0, step=1, limit=4
    $region2: #{vonmises_interpolation_forward.1} parent=1 // loop_pre_header
      _
    $region3: #{vonmises_interpolation_forward.1} parent=1 // loop_header
      %s22 = sphi 0, %s26
      %p23 = scmp.ge.s32.totalorder %s22, 4
      %s30 = sphi 0, %s30
      %s32 = sphi 0, %s30
      %s33 = sphi 0, %s32
      %s47 = sphi 0, %s33
      %s53 = sphi 0, %s55
      %s56 = sphi 0, %s53
      %s57 = sphi 0, %s56
      %s73 = sphi 0, %s57
      %s79 = sphi 0, %s81
      %s82 = sphi 0, %s79
      %s83 = sphi 0, %s82
      %s99 = sphi 0, %s83
    $region4: #{vonmises_interpolation_forward.1} parent=1 // loop_header_branch
      %25 = sbr.rel (%p23) target = $region8
    $region5: #{vonmises_interpolation_forward.1} parent=1 // loop_body
      %s27 = ssub.s32 %s22, 1
      %s28 = ssub.s32 %s22, 2
      %s29 = sadd.s32 %s22, 1
      %s31 = sadd.s32 %s30, 1
      %p34 = scmp.eq.s32.totalorder %s22, 1
      %p35 = scmp.ne.s32.totalorder %s30, %s32
      %p36 = scmp.eq.s32.totalorder %s22, 0
      %p37 = por %p35, %p36
      %p38 = scmp.ne.s32.totalorder %s30, %s32
      %p39 = scmp.eq.s32.totalorder %s27, 1
      %p40 = por %p38, %p39
      %p41 = scmp.ne.s32.totalorder %s32, %s33
      %p42 = scmp.eq.s32.totalorder %s27, 0
      %p43 = por %p41, %p42
      %p44 = scmp.ne.s32.totalorder %s32, %s33
      %p45 = scmp.eq.s32.totalorder %s28, 1
      %p46 = por %p44, %p45
      %p48 = scmp.ne.s32.totalorder %s33, %s47
      %p49 = scmp.eq.s32.totalorder %s28, 0
      %p50 = por %p48, %p49
      %s51 = ssub.s32 %s22, %s29
      %p52 = scmp.eq.s32.totalorder %s51, 0
      %s54 = sadd.s32 %s53, 1
      %s55 = scalar_select %p52, %s53, %s54
      %p58 = pneg %p52
      %p59 = scmp.eq.s32.totalorder %s22, 1
      %p60 = por %p58, %p59
      %p61 = scmp.ne.s32.totalorder %s53, %s56
      %p62 = scmp.eq.s32.totalorder %s22, 0
      %p63 = por %p61, %p62
      %p64 = scmp.ne.s32.totalorder %s53, %s56
      %p65 = scmp.eq.s32.totalorder %s27, 1
      %p66 = por %p64, %p65
      %p67 = scmp.ne.s32.totalorder %s56, %s57
      %p68 = scmp.eq.s32.totalorder %s27, 0
      %p69 = por %p67, %p68
      %p70 = scmp.ne.s32.totalorder %s56, %s57
      %p71 = scmp.eq.s32.totalorder %s28, 1
      %p72 = por %p70, %p71
      %p74 = scmp.ne.s32.totalorder %s57, %s73
      %p75 = scmp.eq.s32.totalorder %s28, 0
      %p76 = por %p74, %p75
      %s77 = ssub.s32 %s22, %s29
      %p78 = scmp.eq.s32.totalorder %s77, 0
      %s80 = sadd.s32 %s79, 1
      %s81 = scalar_select %p78, %s79, %s80
      %p84 = pneg %p78
      %p85 = scmp.eq.s32.totalorder %s22, 1
      %p86 = por %p84, %p85
      %p87 = scmp.ne.s32.totalorder %s79, %s82
      %p88 = scmp.eq.s32.totalorder %s22, 0
      %p89 = por %p87, %p88
      %p90 = scmp.ne.s32.totalorder %s79, %s82
      %p91 = scmp.eq.s32.totalorder %s27, 1
      %p92 = por %p90, %p91
      %p93 = scmp.ne.s32.totalorder %s82, %s83
      %p94 = scmp.eq.s32.totalorder %s27, 0
      %p95 = por %p93, %p94
      %p96 = scmp.ne.s32.totalorder %s82, %s83
      %p97 = scmp.eq.s32.totalorder %s28, 1
      %p98 = por %p96, %p97
      %p100 = scmp.ne.s32.totalorder %s83, %s99
      %p101 = scmp.eq.s32.totalorder %s28, 0
      %p102 = por %p100, %p101
      %p103 = scmp.le.s32.totalorder 1, %s22
      %p104 = scmp.lt.s32.totalorder %s22, 3
      %p105 = pnand %p103, %p104
      %p106 = pneg %p105
      // Predicated region
      $region9: #{vonmises_interpolation_forward.1} parent=5 // pred_check
        _
      $region10: #{vonmises_interpolation_forward.1} parent=5 // pred_check_branch
        %108 = sbr.rel (%p105) target = $region12
      $region11: #{vonmises_interpolation_forward.1} parent=5 // pred_region
        %s109 = ssub.s32 %s22, 1
        // Predicated region
        $region13: #{vonmises_interpolation_forward.1} parent=11 // pred_check
          %p110 = pneg %p43
        $region14: #{vonmises_interpolation_forward.1} parent=11 // pred_check_branch
          %112 = sbr.rel (%p110) target = $region16
        $region15: #{vonmises_interpolation_forward.1} parent=11 // pred_region
          %s114 = ssub.s32 13440, 13440
          %115 = vsyncadd [#allocation5], %s114
          %s116 = sshll.u32 [#allocation4], 4
          %s117 = int_to_ptr.vmem [resolvable:$true] %s116
          %122 = dma.hbm_to_vmem [thread:$0]  %s1, 13440, %s117, [#allocation5], 128, 128, 8
        $region16: #{vonmises_interpolation_forward.1} parent=11 // pred_fallthru
          _
      $region12: #{vonmises_interpolation_forward.1} parent=5 // pred_fallthru
        _
      %p123 = scmp.lt.s32.totalorder %s22, 2
      // Predicated region
      $region17: #{vonmises_interpolation_forward.1} parent=5 // pred_check
        %p124 = pneg %p123
      $region18: #{vonmises_interpolation_forward.1} parent=5 // pred_check_branch
        %126 = sbr.rel (%p124) target = $region20
      $region19: #{vonmises_interpolation_forward.1} parent=5 // pred_region
        // Predicated region
        $region21: #{vonmises_interpolation_forward.1} parent=19 // pred_check
          %p127 = pneg %p63
        $region22: #{vonmises_interpolation_forward.1} parent=19 // pred_check_branch
          %129 = sbr.rel (%p127) target = $region24
        $region23: #{vonmises_interpolation_forward.1} parent=19 // pred_region
          %s130 = sand.u32 %s53, 1
          %s131 = scalar_lea.sflag [#allocation8], %s130
          %s132 = sand.u32 %s53, 1
          %s133 = smul.addr %s132, 4
          %s134 = scalar_lea.vmem [#allocation7], %s133
          %s136 = ssub.s32 64, 64
          %137 = vsyncadd %s131, %s136
          %s138 = smul.addr %s22, 64
          %s139 = scalar_lea.hbm %s2, %s138
          %s141 = sshll.u32 %s134, 4
          %s142 = int_to_ptr.vmem [resolvable:$true] %s141
          %144 = dma.hbm_to_vmem [thread:$0]  %s139, 64, %s142, %s131
        $region24: #{vonmises_interpolation_forward.1} parent=19 // pred_fallthru
          _
      $region20: #{vonmises_interpolation_forward.1} parent=5 // pred_fallthru
        _
      %p145 = scmp.le.s32.totalorder 1, %s22
      %p146 = scmp.lt.s32.totalorder %s22, 3
      %p147 = pnand %p145, %p146
      %p148 = pneg %p147
      // Predicated region
      $region25: #{vonmises_interpolation_forward.1} parent=5 // pred_check
        _
      $region26: #{vonmises_interpolation_forward.1} parent=5 // pred_check_branch
        %150 = sbr.rel (%p147) target = $region28
      $region27: #{vonmises_interpolation_forward.1} parent=5 // pred_region
        %s151 = ssub.s32 %s22, 1
        // Predicated region
        $region29: #{vonmises_interpolation_forward.1} parent=27 // pred_check
          %p152 = pneg %p43
        $region30: #{vonmises_interpolation_forward.1} parent=27 // pred_check_branch
          %154 = sbr.rel (%p152) target = $region32
        $region31: #{vonmises_interpolation_forward.1} parent=27 // pred_region
          %155 = dma.done [#allocation5], 13440
        $region32: #{vonmises_interpolation_forward.1} parent=27 // pred_fallthru
          _
        %s156 = sand.u32 %s56, 1
        %s157 = scalar_lea.sflag [#allocation8], %s156
        %s158 = sand.u32 %s56, 1
        %s159 = smul.addr %s158, 4
        %s160 = scalar_lea.vmem [#allocation7], %s159
        // Predicated region
        $region33: #{vonmises_interpolation_forward.1} parent=27 // pred_check
          %p161 = pneg %p69
        $region34: #{vonmises_interpolation_forward.1} parent=27 // pred_check_branch
          %163 = sbr.rel (%p161) target = $region36
        $region35: #{vonmises_interpolation_forward.1} parent=27 // pred_region
          %164 = dma.done %s157, 64
        $region36: #{vonmises_interpolation_forward.1} parent=27 // pred_fallthru
          _
        %p165 = pneg %p43
        %p166 = pneg %p40
        %s167 = sand.u32 %s56, 1
        %s168 = scalar_lea.sflag [#allocation8], %s167
        %s169 = sand.u32 %s56, 1
        %s170 = smul.addr %s169, 4
        %s171 = scalar_lea.vmem [#allocation7], %s170
        %p172 = pneg %p69
        %p173 = pneg %p66
        %p174 = pneg %p95
        %p175 = pneg %p92
        %s176 = sand.u32 %s82, 1
        %s177 = scalar_lea.sflag [#allocation6], %s176
        %s178 = sand.u32 %s82, 1
        %s179 = smul.addr %s178, 4
        %s180 = scalar_lea.vmem [#allocation9], %s179
        %s181 = sld [smem:[#allocation3 + %s27]]
        %s182 = smul.u32 %s181, 40
        %s183 = scalar_lea.vmem [#allocation4], %s182
        %v184 = vld [vmem:[%s183] sm:$0xff]
        %v185 = vld [vmem:[%s183 + $0x8] sm:$0xff]
        %v186 = vld [vmem:[%s183 + $0x10] sm:$0xff]
        %v187 = vld [vmem:[%s183 + $0x18] sm:$0xff]
        %v188 = vld [vmem:[%s183 + $0x20] sm:$0xf]
        %v189 = vld [vmem:[%s160] sm:$0xf]
        %vm190 = vcmask 293888
        %v192 = vsel %vm190, %v189, 0
        %vm194 = vcmask 1043456
        %v196 = vsel %vm194, %v188, 0
        %198 = vmatprep.subr.mxu0 0.0
        %199 = vmatpush1.msra.mxu0 %v184
        %200 = vmatprep.subr.mxu0 0.0
        %201 = vmatpush1.msra.mxu0 %v185
        %202 = vmatprep.subr.mxu0 0.0
        %203 = vmatpush1.msra.mxu0 %v186
        %204 = vmatprep.subr.mxu0 0.0
        %205 = vmatpush1.msra.mxu0 %v187
        %206 = vmatprep.subr.mxu0 0.0
        %207 = vmatpush1.msra.mxu0 %v196
        %208 = vmatprep.subr.mxu0 0.0
        %209 = vmatpush1.msra.mxu0 0.0
        %210 = vmatprep.subr.mxu0 0.0
        %211 = vmatpush1.msra.mxu0 0.0
        %212 = vmatprep.subr.mxu0 0.0
        %213 = vmatpush1.msra.mxu0 0.0
        %214 = vmatprep.subr.mxu0 0.0
        %215 = vmatpush1.msra.mxu0 0.0
        %216 = vmatprep.subr.mxu0 0.0
        %217 = vmatpush1.msra.mxu0 0.0
        %218 = vmatprep.subr.mxu0 0.0
        %219 = vmatpush1.msra.mxu0 0.0
        %220 = vmatprep.subr.mxu0 0.0
        %221 = vmatpush1.msra.mxu0 0.0
        %222 = vmatprep.subr.mxu0 0.0
        %223 = vmatpush1.msra.mxu0 0.0
        %224 = vmatprep.subr.mxu0 0.0
        %225 = vmatpush1.msra.mxu0 0.0
        %226 = vmatprep.subr.mxu0 0.0
        %227 = vmatpush1.msra.mxu0 0.0
        %228 = vmatprep.subr.mxu0 0.0
        %229 = vmatpush1.msra.mxu0 0.0
        %230 = vmatprep.subr.mxu0 0.0
        %231 = vmatpush1.msra.mxu0 0.0
        %232 = vmatprep.subr.mxu0 0.0
        %233 = vmatpush1.msra.mxu0 0.0
        %234 = vmatprep.subr.mxu0 0.0
        %235 = vmatpush1.msra.mxu0 0.0
        %236 = vmatprep.subr.mxu0 0.0
        %237 = vmatpush1.msra.mxu0 0.0
        %238 = vmatprep.subr.mxu0 0.0
        %239 = vmatpush1.msra.mxu0 0.0
        %240 = vmatprep.subr.mxu0 0.0
        %241 = vmatpush1.msra.mxu0 0.0
        %242 = vmatprep.subr.mxu0 0.0
        %243 = vmatpush1.msra.mxu0 0.0
        %244 = vmatprep.subr.mxu0 0.0
        %245 = vmatpush1.msra.mxu0 0.0
        %246 = vmatprep.subr.mxu0 0.0
        %247 = vmatpush1.msra.mxu0 0.0
        %248 = vmatprep.subr.mxu0 0.0
        %249 = vmatpush1.msra.mxu0 0.0
        %250 = vmatprep.subr.mxu0 0.0
        %251 = vmatpush1.msra.mxu0 0.0
        %252 = vmatprep.subr.mxu0 0.0
        %253 = vmatpush1.msra.mxu0 0.0
        %254 = vmatprep.subr.mxu0 0.0
        %255 = vmatpush1.msra.mxu0 0.0
        %256 = vmatprep.subr.mxu0 0.0
        %257 = vmatpush1.msra.mxu0 0.0
        %258 = vmatprep.subr.mxu0 0.0
        %259 = vmatpush1.msra.mxu0 0.0
        %260 = vmatprep.subr.mxu0 0.0
        %261 = vmatpush1.msra.mxu0 0.0
        %262 = vmatprep.mubr.f32.mxu0 0.0
        %263 = vmatmul.mubr.f32.gmra.mrb[0].mxu0 %v192
        %v264 = vpop.f32.mrb[0].mxu0
        %v265 = vadd.f32 0.0, %v264
        %v266 = vpop.f32.mrb[0].mxu0
        %267 = vdwg.mxu0
        %vm268 = vcmask 289792
        %269 = vst.msk [vmem:[%s180] sm:$0xf] %vm268, %v265
        %s270 = sand.u32 %s82, 1
        %s271 = scalar_lea.sflag [#allocation6], %s270
        %s272 = sand.u32 %s82, 1
        %s273 = smul.addr %s272, 4
        %s274 = scalar_lea.vmem [#allocation9], %s273
        // Predicated region
        $region37: #{vonmises_interpolation_forward.1} parent=27 // pred_check
          %p275 = pneg %p92
        $region38: #{vonmises_interpolation_forward.1} parent=27 // pred_check_branch
          %277 = sbr.rel (%p275) target = $region40
        $region39: #{vonmises_interpolation_forward.1} parent=27 // pred_region
          %s279 = ssub.s32 64, 64
          %280 = vsyncadd %s271, %s279
          %s281 = smul.addr %s27, 64
          %s282 = scalar_lea.hbm %s3, %s281
          %s284 = sshll.u32 %s274, 4
          %s285 = int_to_ptr.vmem [resolvable:$true] %s284
          %287 = dma.vmem_to_hbm [thread:$0]  %s285, 64, %s282, %s271
        $region40: #{vonmises_interpolation_forward.1} parent=27 // pred_fallthru
          _
      $region28: #{vonmises_interpolation_forward.1} parent=5 // pred_fallthru
        _
      %p288 = scmp.le.s32.totalorder 2, %s22
      // Predicated region
      $region41: #{vonmises_interpolation_forward.1} parent=5 // pred_check
        %p289 = pneg %p288
      $region42: #{vonmises_interpolation_forward.1} parent=5 // pred_check_branch
        %291 = sbr.rel (%p289) target = $region44
      $region43: #{vonmises_interpolation_forward.1} parent=5 // pred_region
        %s292 = ssub.s32 %s22, 2
        // Predicated region
        $region45: #{vonmises_interpolation_forward.1} parent=43 // pred_check
          %p293 = pneg %p98
        $region46: #{vonmises_interpolation_forward.1} parent=43 // pred_check_branch
          %295 = sbr.rel (%p293) target = $region48
        $region47: #{vonmises_interpolation_forward.1} parent=43 // pred_region
          %s296 = sand.u32 %s83, 1
          %s297 = scalar_lea.sflag [#allocation6], %s296
          %s298 = sand.u32 %s83, 1
          %s299 = smul.addr %s298, 4
          %s300 = scalar_lea.vmem [#allocation9], %s299
          %301 = dma.done %s297, 64
        $region48: #{vonmises_interpolation_forward.1} parent=43 // pred_fallthru
          _
      $region44: #{vonmises_interpolation_forward.1} parent=5 // pred_fallthru
        _
    $region6: #{vonmises_interpolation_forward.1} parent=1 // loop_footer
      %s26 = sadd.s32 1, %s22
    $region7: #{vonmises_interpolation_forward.1} parent=1 // loop_footer_branch
      %21 = sbr.rel target = $region3
    $region8: #{vonmises_interpolation_forward.1} parent=1 // loop_exit
      _
    %302 = vsyncpa [#allocation5], 1
    %s303 = scalar_lea.sflag [#allocation5], 1
    %304 = vsyncpa %s303, 1
    %305 = vsyncpa [#allocation8], 1
    %s306 = scalar_lea.sflag [#allocation8], 1
    %307 = vsyncpa %s306, 1
    %308 = vsyncpa [#allocation6], 1
    %s309 = scalar_lea.sflag [#allocation6], 1
    %310 = vsyncpa %s309, 1

</llo_original>
